<compile_context>
chip_gen: v7x
topology: tpu7x:2x2x1
jax: 0.10.0
libtpu: 0.0.40
codegen_flags: <defaults>
</compile_context>

<pallas_src>
import jax
import jax.numpy as jnp
from jax.experimental import pallas as pl
from jax.experimental.pallas import tpu as pltpu


def _round_up(x, m):
    return (x + m - 1) // m * m


def _chip_info():
    """Best-effort (is_v7x_like, tensorcores_per_chip) from the backend."""
    try:
        kind = jax.devices()[0].device_kind.lower()
    except Exception:
        kind = ""
    is_v7 = ("v7" in kind) or ("tpu7" in kind) or ("7x" in kind)
    multi_tc = is_v7 or ("v4" in kind)      # megacore-style chips (2 TCs share the grid)
    return is_v7, (2 if multi_tc else 1)


def edge_mlp_kernel(src_ref, tgt_ref, w1a_ref, w1b_ref, b1_ref,
                    w2_ref, b2_ref, out_ref):
    # fc1 on the concatenated features: cat([src,tgt]) @ W1 == src@W1a + tgt@W1b.
    # bf16 operands, f32 accumulation on the MXU.
    h = jnp.dot(src_ref[...], w1a_ref[...], preferred_element_type=jnp.float32)
    h = h + jnp.dot(tgt_ref[...], w1b_ref[...], preferred_element_type=jnp.float32)
    h = jnp.maximum(h + b1_ref[...], 0.0)          # bias + ReLU in f32 (VPU)
    # F.dropout(p=0.5): identity in inference mode.
    # TODO(synk): training-mode dropout (PyTorch RNG) intentionally not reproduced.
    # Cast the (tm, 64) hidden temp to bf16: halves its vreg/VMEM footprint and
    # keeps fc2 on the MXU's native bf16 path; accumulation stays f32.
    h = h.astype(w2_ref.dtype)
    out = jnp.dot(h, w2_ref[...], preferred_element_type=jnp.float32) + b2_ref[...]
    out_ref[...] = out.astype(out_ref.dtype)


def prepare_edge_mlp_params(w1, b1, w2, b2, *, compute_dtype=jnp.bfloat16):
    """One-time weight prep (hoisted out of the per-call path).

    w1: (2C, H), b1: (H,), w2: (H, O), b2: (O,).
    Splits W1 so no concat is needed anywhere and casts weights once.
    """
    two_c, H = w1.shape
    C = two_c // 2
    O = w2.shape[1]
    w1a = w1[:C].astype(compute_dtype)             # (C, H) acts on src
    w1b = w1[C:].astype(compute_dtype)             # (C, H) acts on tgt
    b1_2d = b1.reshape(1, H).astype(jnp.float32)
    w2_c = w2.astype(compute_dtype)                # (H, O) bf16 fc2 weights
    b2_2d = b2.reshape(1, O).astype(jnp.float32)
    return (w1a, w1b, b1_2d, w2_c, b2_2d)


def edge_mlp_apply(params, src, tgt, *, tile_m=None, out_dtype=jnp.bfloat16):
    """Eval-mode EdgeMLP forward with pre-prepared params.

    src, tgt: (N, C).  Returns (N, O) in out_dtype (bf16 by default).
    """
    w1a, w1b, b1_2d, w2_c, b2_2d = params
    compute_dtype = w1a.dtype
    N, C = src.shape
    H = w1a.shape[1]
    O = w2_c.shape[1]

    is_v7, num_tc = _chip_info()

    # ---- Row-tile selection -------------------------------------------------
    # Big tiles amortize the ~0.35 us per-grid-step overhead; v7x is capped at
    # 8192 because its VMEM is 64 MiB and the (tm,32)/(tm,2) blocks lane-pad
    # to 128 lanes (4x / 64x inflation).
    if tile_m is None:
        tile_m = 8192 if is_v7 else 16384
    n8 = _round_up(max(N, 8), 8)
    tm = min(int(tile_m), n8)
    if num_tc > 1 and n8 >= 16:
        # Multi-TC chips only: keep >=2 grid steps (>=2 per core when N allows)
        # so dimension_semantics=("parallel",) actually feeds both TensorCores.
        target_steps = 2 * num_tc if n8 >= 32 * num_tc else num_tc
        tm = min(tm, _round_up(pl.cdiv(n8, target_steps), 8))
    tm = max(8, _round_up(tm, 8))

    # ---- Input casting / padding (pad rows are sliced off afterwards) -------
    src_c = src if src.dtype == compute_dtype else src.astype(compute_dtype)
    tgt_c = tgt if tgt.dtype == compute_dtype else tgt.astype(compute_dtype)
    n_pad = _round_up(N, tm)
    if n_pad != N:
        pad_rows = n_pad - N
        src_c = jnp.pad(src_c, ((0, pad_rows), (0, 0)))
        tgt_c = jnp.pad(tgt_c, ((0, pad_rows), (0, 0)))
    grid = (n_pad // tm,)

    # ---- Scoped-VMEM budget for the larger tiles -----------------------------
    lane = 128
    in_b = jnp.dtype(compute_dtype).itemsize
    out_b = jnp.dtype(out_dtype).itemsize
    # double-buffered src+tgt+out blocks (lane-padded) + in-kernel f32 temps
    per_row = 2 * (2 * lane * in_b) + 2 * (lane * out_b) + 2 * (lane * 4)
    vmem_needed = per_row * tm + (4 << 20)
    vmem_cap = (48 << 20) if is_v7 else (100 << 20)
    vmem_limit = int(min(max(vmem_needed, 32 << 20), vmem_cap))

    cost = pl.CostEstimate(
        flops=2 * N * (2 * C * H + H * O),
        transcendentals=0,
        bytes_accessed=(N * (2 * C * in_b + O * out_b)
                        + (2 * C * H + H * O) * in_b + (H + O) * 4),
    )

    out_pad = pl.pallas_call(
        edge_mlp_kernel,
        out_shape=jax.ShapeDtypeStruct((n_pad, O), out_dtype),
        grid_spec=pltpu.PrefetchScalarGridSpec(
            num_scalar_prefetch=0,
            grid=grid,
            in_specs=[
                pl.BlockSpec((tm, C), lambda i: (i, 0)),   # src tile (bf16)
                pl.BlockSpec((tm, C), lambda i: (i, 0)),   # tgt tile (bf16)
                pl.BlockSpec((C, H), lambda i: (0, 0)),    # W1a (resident)
                pl.BlockSpec((C, H), lambda i: (0, 0)),    # W1b (resident)
                pl.BlockSpec((1, H), lambda i: (0, 0)),    # b1 (f32, resident)
                pl.BlockSpec((H, O), lambda i: (0, 0)),    # W2 (bf16, resident)
                pl.BlockSpec((1, O), lambda i: (0, 0)),    # b2 (f32, resident)
            ],
            out_specs=pl.BlockSpec((tm, O), lambda i: (i, 0)),
        ),
        compiler_params=pltpu.CompilerParams(
            dimension_semantics=("parallel",),
            vmem_limit_bytes=vmem_limit),
        cost_estimate=cost,
    )(src_c, tgt_c, w1a, w1b, b1_2d, w2_c, b2_2d)

    return out_pad[:N] if n_pad != N else out_pad


def edge_mlp(src, tgt, w1, b1, w2, b2, *, compute_dtype=jnp.bfloat16, **kwargs):
    """Convenience one-shot wrapper (prefer prepare_... + ..._apply in a loop)."""
    params = prepare_edge_mlp_params(w1, b1, w2, b2, compute_dtype=compute_dtype)
    return edge_mlp_apply(params, src, tgt, **kwargs)


def edge_mlp_ref_f32(src, tgt, w1, b1, w2, b2):
    """f32 reference on the same (bf16-rounded) operands the kernel consumes."""
    x = jnp.concatenate([src, tgt], axis=1)
    h = jnp.maximum(x @ w1 + b1, 0.0)
    return h @ w2 + b2


if __name__ == "__main__":
    key = jax.random.PRNGKey(0)
    k_src, k_tgt, k_w1, k_b1, k_w2, k_b2 = jax.random.split(key, 6)

    # Small shapes consistent with the module: C node features per endpoint,
    # N edges (deliberately NOT a multiple of the tile to exercise padding),
    # hidden 64, 2 output classes.
    N, C, H, O = 200, 32, 64, 2

    src = jax.random.normal(k_src, (N, C), dtype=jnp.float32)
    tgt = jax.random.normal(k_tgt, (N, C), dtype=jnp.float32)

    # Deterministic parameter init (synthetic; shapes from nn.Linear defs).
    w1 = jax.random.normal(k_w1, (2 * C, H), dtype=jnp.float32) * 0.05
    b1 = jax.random.normal(k_b1, (H,), dtype=jnp.float32) * 0.05
    w2 = jax.random.normal(k_w2, (H, O), dtype=jnp.float32) * 0.05
    b2 = jax.random.normal(k_b2, (O,), dtype=jnp.float32) * 0.05

    # One-time weight prep (hoisted out of the per-call path).
    params = prepare_edge_mlp_params(w1, b1, w2, b2)

    out = edge_mlp_apply(params, src, tgt)
    out = jax.block_until_ready(out)
    out_f32 = out.astype(jnp.float32)

    # Reference: f32 math on the same bf16-rounded activations / fc1 weights.
    # The kernel additionally rounds h / W2 / the output to bf16, so tolerance
    # is relaxed accordingly (errors here are ~1e-3 on ~0.1-magnitude logits).
    src_r = src.astype(jnp.bfloat16).astype(jnp.float32)
    tgt_r = tgt.astype(jnp.bfloat16).astype(jnp.float32)
    w1_r = w1.astype(jnp.bfloat16).astype(jnp.float32)
    ref = edge_mlp_ref_f32(src_r, tgt_r, w1_r, b1, w2, b2)

    assert out.shape == (N, O)
    assert jnp.allclose(out_f32, ref, atol=2e-2, rtol=2e-2), \
        float(jnp.max(jnp.abs(out_f32 - ref)))

    print("KERNEL_OK")
</pallas_src>

<mosaic_0001>
module attributes {stable_mosaic.version = 11 : i64} {
  func.func @edge_mlp_kernel(%arg0: i32, %arg1: memref<200x32xbf16, #tpu.memory_space<vmem>>, %arg2: memref<200x32xbf16, #tpu.memory_space<vmem>>, %arg3: memref<32x64xbf16, #tpu.memory_space<vmem>>, %arg4: memref<32x64xbf16, #tpu.memory_space<vmem>>, %arg5: memref<1x64xf32, #tpu.memory_space<vmem>>, %arg6: memref<64x2xbf16, #tpu.memory_space<vmem>>, %arg7: memref<1x2xf32, #tpu.memory_space<vmem>>, %arg8: memref<200x2xbf16, #tpu.memory_space<vmem>>) attributes {dimension_semantics = [#tpu.dimension_semantics<parallel>], iteration_bounds = array<i64: 1>, scalar_prefetch = 0 : i64, scratch_operands = 0 : i64, tpu.core_type = #tpu.core_type<tc>, window_params = [{transform_indices = @transform_0, window_bounds = array<i64: 200, 32>}, {transform_indices = @transform_1, window_bounds = array<i64: 200, 32>}, {pipeline_mode = #tpu.pipeline_mode<synchronous>, transform_indices = @transform_2, window_bounds = array<i64: 32, 64>}, {pipeline_mode = #tpu.pipeline_mode<synchronous>, transform_indices = @transform_3, window_bounds = array<i64: 32, 64>}, {pipeline_mode = #tpu.pipeline_mode<synchronous>, transform_indices = @transform_4, window_bounds = array<i64: 1, 64>}, {pipeline_mode = #tpu.pipeline_mode<synchronous>, transform_indices = @transform_5, window_bounds = array<i64: 64, 2>}, {pipeline_mode = #tpu.pipeline_mode<synchronous>, transform_indices = @transform_6, window_bounds = array<i64: 1, 2>}, {transform_indices = @transform_7, window_bounds = array<i64: 200, 2>}]} {
    %c0 = arith.constant 0 : index
    %c0_0 = arith.constant 0 : index
    %0 = vector.load %arg1[%c0, %c0_0] : memref<200x32xbf16, #tpu.memory_space<vmem>>, vector<200x32xbf16>
    %c0_1 = arith.constant 0 : index
    %c0_2 = arith.constant 0 : index
    %1 = vector.load %arg3[%c0_1, %c0_2] : memref<32x64xbf16, #tpu.memory_space<vmem>>, vector<32x64xbf16>
    %cst = arith.constant dense<0.000000e+00> : vector<200x64xf32>
    %2 = tpu.matmul %0, %1, %cst {dimension_numbers = #tpu.dot_dimension_numbers<[1], [0], [0], [1], [0, 0, 1, 1], [], []>} : vector<200x32xbf16>, vector<32x64xbf16>, vector<200x64xf32> -> vector<200x64xf32>
    %c0_3 = arith.constant 0 : index
    %c0_4 = arith.constant 0 : index
    %3 = vector.load %arg2[%c0_3, %c0_4] : memref<200x32xbf16, #tpu.memory_space<vmem>>, vector<200x32xbf16>
    %c0_5 = arith.constant 0 : index
    %c0_6 = arith.constant 0 : index
    %4 = vector.load %arg4[%c0_5, %c0_6] : memref<32x64xbf16, #tpu.memory_space<vmem>>, vector<32x64xbf16>
    %cst_7 = arith.constant dense<0.000000e+00> : vector<200x64xf32>
    %5 = tpu.matmul %3, %4, %cst_7 {dimension_numbers = #tpu.dot_dimension_numbers<[1], [0], [0], [1], [0, 0, 1, 1], [], []>} : vector<200x32xbf16>, vector<32x64xbf16>, vector<200x64xf32> -> vector<200x64xf32>
    %6 = arith.addf %2, %5 : vector<200x64xf32>
    %c0_8 = arith.constant 0 : index
    %c0_9 = arith.constant 0 : index
    %7 = vector.load %arg5[%c0_8, %c0_9] : memref<1x64xf32, #tpu.memory_space<vmem>>, vector<1x64xf32>
    %8 = vector.broadcast %7 : vector<1x64xf32> to vector<200x64xf32>
    %9 = arith.addf %6, %8 : vector<200x64xf32>
    %cst_10 = arith.constant 0.000000e+00 : f32
    %10 = vector.broadcast %cst_10 : f32 to vector<200x64xf32>
    %11 = arith.maximumf %9, %10 : vector<200x64xf32>
    %12 = arith.truncf %11 : vector<200x64xf32> to vector<200x64xbf16>
    %c0_11 = arith.constant 0 : index
    %c0_12 = arith.constant 0 : index
    %13 = vector.load %arg6[%c0_11, %c0_12] : memref<64x2xbf16, #tpu.memory_space<vmem>>, vector<64x2xbf16>
    %cst_13 = arith.constant dense<0.000000e+00> : vector<200x2xf32>
    %14 = tpu.matmul %12, %13, %cst_13 {dimension_numbers = #tpu.dot_dimension_numbers<[1], [0], [0], [1], [0, 0, 1, 1], [], []>} : vector<200x64xbf16>, vector<64x2xbf16>, vector<200x2xf32> -> vector<200x2xf32>
    %c0_14 = arith.constant 0 : index
    %c0_15 = arith.constant 0 : index
    %15 = vector.load %arg7[%c0_14, %c0_15] : memref<1x2xf32, #tpu.memory_space<vmem>>, vector<1x2xf32>
    %16 = vector.broadcast %15 : vector<1x2xf32> to vector<200x2xf32>
    %17 = arith.addf %14, %16 : vector<200x2xf32>
    %18 = arith.truncf %17 : vector<200x2xf32> to vector<200x2xbf16>
    %c0_16 = arith.constant 0 : index
    %c0_17 = arith.constant 0 : index
    %19 = vector.load %arg8[%c0_16, %c0_17] : memref<200x2xbf16, #tpu.memory_space<vmem>>, vector<200x2xbf16>
    tpu.vector_store %arg8[%c0_16, %c0_17], %18 {strides = array<i32>} : memref<200x2xbf16, #tpu.memory_space<vmem>>, vector<200x2xbf16>,
    return
  }
  func.func @transform_0(%arg0: i32) -> (i32, i32) {
    %c0_i32 = arith.constant 0 : i32
    %c0_i32_0 = arith.constant 0 : i32
    return %arg0, %c0_i32 : i32, i32
  }
  func.func @transform_1(%arg0: i32) -> (i32, i32) {
    %c0_i32 = arith.constant 0 : i32
    %c0_i32_0 = arith.constant 0 : i32
    return %arg0, %c0_i32 : i32, i32
  }
  func.func @transform_2(%arg0: i32) -> (i32, i32) {
    %c0_i32 = arith.constant 0 : i32
    %c0_i32_0 = arith.constant 0 : i32
    %c0_i32_1 = arith.constant 0 : i32
    return %c0_i32, %c0_i32_0 : i32, i32
  }
  func.func @transform_3(%arg0: i32) -> (i32, i32) {
    %c0_i32 = arith.constant 0 : i32
    %c0_i32_0 = arith.constant 0 : i32
    %c0_i32_1 = arith.constant 0 : i32
    return %c0_i32, %c0_i32_0 : i32, i32
  }
  func.func @transform_4(%arg0: i32) -> (i32, i32) {
    %c0_i32 = arith.constant 0 : i32
    %c0_i32_0 = arith.constant 0 : i32
    %c0_i32_1 = arith.constant 0 : i32
    return %c0_i32, %c0_i32_0 : i32, i32
  }
  func.func @transform_5(%arg0: i32) -> (i32, i32) {
    %c0_i32 = arith.constant 0 : i32
    %c0_i32_0 = arith.constant 0 : i32
    %c0_i32_1 = arith.constant 0 : i32
    return %c0_i32, %c0_i32_0 : i32, i32
  }
  func.func @transform_6(%arg0: i32) -> (i32, i32) {
    %c0_i32 = arith.constant 0 : i32
    %c0_i32_0 = arith.constant 0 : i32
    %c0_i32_1 = arith.constant 0 : i32
    return %c0_i32, %c0_i32_0 : i32, i32
  }
  func.func @transform_7(%arg0: i32) -> (i32, i32) {
    %c0_i32 = arith.constant 0 : i32
    %c0_i32_0 = arith.constant 0 : i32
    return %arg0, %c0_i32 : i32, i32
  }
}

</mosaic_0001>

<llo_original>
// kernel: tpu_custom_call.1
$region0: #{tpu_custom_call.1}
  #allocation0 [shape = 'u32[]', space=smem, size = 0x4, offset = 0x4, fixed_abs, tag = 'smem constant byte address 0x4 - core index']
  #allocation1 [shape = 'u32[144,128]{1,0:T(1,128)}', space=vmem, size = 0x12000, scoped, tag = 'internal scratch']
  %s0 = inlined_call_operand.vmem [shape: bf16[200,32], index: 0, kind: input, shape index: {}]
  %s1 = inlined_call_operand.vmem [shape: bf16[200,32], index: 1, kind: input, shape index: {}]
  %s2 = inlined_call_operand.vmem [shape: bf16[32,64], index: 2, kind: input, shape index: {}]
  %s3 = inlined_call_operand.vmem [shape: bf16[32,64], index: 3, kind: input, shape index: {}]
  %s4 = inlined_call_operand.vmem [shape: f32[1,64], index: 4, kind: input, shape index: {}]
  %s5 = inlined_call_operand.vmem [shape: bf16[64,2], index: 5, kind: input, shape index: {}]
  %s6 = inlined_call_operand.vmem [shape: f32[1,2], index: 6, kind: input, shape index: {}]
  %s7 = inlined_call_operand.vmem [shape: bf16[200,2], index: 7, kind: output, shape index: {}]
  %s8 = sld [smem:[#allocation0]]
  $region38: #{tpu_custom_call.1} parent=0
    _
  %s10 = ssub.s32 1, %s8
  %s11 = scalar_select 0, %s10, %s8
  // Predicated region
  $region2: #{tpu_custom_call.1} parent=0 // pred_check
    _
  $region3: #{tpu_custom_call.1} parent=0 // pred_check_branch
    %13 = sbr.rel (0) target = $region5
  $region4: #{tpu_custom_call.1} parent=0 // pred_region
    _
  $region5: #{tpu_custom_call.1} parent=0 // pred_fallthru
    _
  // Predicated region
  $region6: #{tpu_custom_call.1} parent=0 // pred_check
    _
  $region7: #{tpu_custom_call.1} parent=0 // pred_check_branch
    %15 = sbr.rel (0) target = $region9
  $region8: #{tpu_custom_call.1} parent=0 // pred_region
    _
  $region9: #{tpu_custom_call.1} parent=0 // pred_fallthru
    _
  // Predicated region
  $region10: #{tpu_custom_call.1} parent=0 // pred_check
    _
  $region11: #{tpu_custom_call.1} parent=0 // pred_check_branch
    %17 = sbr.rel (0) target = $region13
  $region12: #{tpu_custom_call.1} parent=0 // pred_region
    _
  $region13: #{tpu_custom_call.1} parent=0 // pred_fallthru
    _
  // Predicated region
  $region14: #{tpu_custom_call.1} parent=0 // pred_check
    _
  $region15: #{tpu_custom_call.1} parent=0 // pred_check_branch
    %19 = sbr.rel (0) target = $region17
  $region16: #{tpu_custom_call.1} parent=0 // pred_region
    _
  $region17: #{tpu_custom_call.1} parent=0 // pred_fallthru
    _
  // Predicated region
  $region18: #{tpu_custom_call.1} parent=0 // pred_check
    _
  $region19: #{tpu_custom_call.1} parent=0 // pred_check_branch
    %21 = sbr.rel (0) target = $region21
  $region20: #{tpu_custom_call.1} parent=0 // pred_region
    _
  $region21: #{tpu_custom_call.1} parent=0 // pred_fallthru
    _
  // Predicated region
  $region22: #{tpu_custom_call.1} parent=0 // pred_check
    _
  $region23: #{tpu_custom_call.1} parent=0 // pred_check_branch
    %23 = sbr.rel (0) target = $region25
  $region24: #{tpu_custom_call.1} parent=0 // pred_region
    _
  $region25: #{tpu_custom_call.1} parent=0 // pred_fallthru
    _
  // Predicated region
  $region26: #{tpu_custom_call.1} parent=0 // pred_check
    _
  $region27: #{tpu_custom_call.1} parent=0 // pred_check_branch
    %25 = sbr.rel (0) target = $region29
  $region28: #{tpu_custom_call.1} parent=0 // pred_region
    _
  $region29: #{tpu_custom_call.1} parent=0 // pred_fallthru
    _
  %v27 = vld [vmem:[%s0] sm:$0xf]
  %v28 = vld [vmem:[%s0 + $0x4] sm:$0xf]
  %v29 = vld [vmem:[%s0 + $0x8] sm:$0xf]
  %v30 = vld [vmem:[%s0 + $0xc] sm:$0xf]
  %v31 = vld [vmem:[%s0 + $0x10] sm:$0xf]
  %v32 = vld [vmem:[%s0 + $0x14] sm:$0xf]
  %v33 = vld [vmem:[%s0 + $0x18] sm:$0xf]
  %v34 = vld [vmem:[%s0 + $0x1c] sm:$0xf]
  %v35 = vld [vmem:[%s0 + $0x20] sm:$0xf]
  %v36 = vld [vmem:[%s0 + $0x24] sm:$0xf]
  %v37 = vld [vmem:[%s0 + $0x28] sm:$0xf]
  %v38 = vld [vmem:[%s0 + $0x2c] sm:$0xf]
  %v39 = vld [vmem:[%s0 + $0x30] sm:$0xf]
  %v40 = vld [vmem:[%s0 + $0x34] sm:$0xf]
  %v41 = vld [vmem:[%s0 + $0x38] sm:$0xf]
  %v42 = vld [vmem:[%s0 + $0x3c] sm:$0xf]
  %v43 = vld [vmem:[%s0 + $0x40] sm:$0xf]
  %v44 = vld [vmem:[%s0 + $0x44] sm:$0xf]
  %v45 = vld [vmem:[%s0 + $0x48] sm:$0xf]
  %v46 = vld [vmem:[%s0 + $0x4c] sm:$0xf]
  %v47 = vld [vmem:[%s0 + $0x50] sm:$0xf]
  %v48 = vld [vmem:[%s0 + $0x54] sm:$0xf]
  %v49 = vld [vmem:[%s0 + $0x58] sm:$0xf]
  %v50 = vld [vmem:[%s0 + $0x5c] sm:$0xf]
  %v51 = vld [vmem:[%s0 + $0x60] sm:$0xf]
  %v52 = vld [vmem:[%s2] sm:$0xf]
  %v53 = vld [vmem:[%s2 + $0x4] sm:$0xf]
  %v54 = vld [vmem:[%s2 + $0x8] sm:$0xf]
  %v55 = vld [vmem:[%s2 + $0xc] sm:$0xf]
  %v56 = vld [vmem:[%s1] sm:$0xf]
  %v57 = vld [vmem:[%s1 + $0x4] sm:$0xf]
  %v58 = vld [vmem:[%s1 + $0x8] sm:$0xf]
  %v59 = vld [vmem:[%s1 + $0xc] sm:$0xf]
  %v60 = vld [vmem:[%s1 + $0x10] sm:$0xf]
  %v61 = vld [vmem:[%s1 + $0x14] sm:$0xf]
  %v62 = vld [vmem:[%s1 + $0x18] sm:$0xf]
  %v63 = vld [vmem:[%s1 + $0x1c] sm:$0xf]
  %v64 = vld [vmem:[%s1 + $0x20] sm:$0xf]
  %v65 = vld [vmem:[%s1 + $0x24] sm:$0xf]
  %v66 = vld [vmem:[%s1 + $0x28] sm:$0xf]
  %v67 = vld [vmem:[%s1 + $0x2c] sm:$0xf]
  %v68 = vld [vmem:[%s1 + $0x30] sm:$0xf]
  %v69 = vld [vmem:[%s1 + $0x34] sm:$0xf]
  %v70 = vld [vmem:[%s1 + $0x38] sm:$0xf]
  %v71 = vld [vmem:[%s1 + $0x3c] sm:$0xf]
  %v72 = vld [vmem:[%s1 + $0x40] sm:$0xf]
  %v73 = vld [vmem:[%s1 + $0x44] sm:$0xf]
  %v74 = vld [vmem:[%s1 + $0x48] sm:$0xf]
  %v75 = vld [vmem:[%s1 + $0x4c] sm:$0xf]
  %v76 = vld [vmem:[%s1 + $0x50] sm:$0xf]
  %v77 = vld [vmem:[%s1 + $0x54] sm:$0xf]
  %v78 = vld [vmem:[%s1 + $0x58] sm:$0xf]
  %v79 = vld [vmem:[%s1 + $0x5c] sm:$0xf]
  %v80 = vld [vmem:[%s1 + $0x60] sm:$0xf]
  %v81 = vld [vmem:[%s3] sm:$0xf]
  %v82 = vld [vmem:[%s3 + $0x4] sm:$0xf]
  %v83 = vld [vmem:[%s3 + $0x8] sm:$0xf]
  %v84 = vld [vmem:[%s3 + $0xc] sm:$0xf]
  %v110 = vunpack.c.l.b16 %v56
  %v111 = vunpack.c.l.b16 %v57
  %v112 = vunpack.c.l.b16 %v58
  %v113 = vunpack.c.l.b16 %v59
  %v114 = vunpack.c.l.b16 %v60
  %v115 = vunpack.c.l.b16 %v61
  %v116 = vunpack.c.l.b16 %v62
  %v117 = vunpack.c.l.b16 %v63
  %v118 = vunpack.c.l.b16 %v64
  %v119 = vunpack.c.l.b16 %v65
  %v120 = vunpack.c.l.b16 %v66
  %v121 = vunpack.c.l.b16 %v67
  %v122 = vunpack.c.l.b16 %v68
  %v123 = vunpack.c.l.b16 %v69
  %v124 = vunpack.c.l.b16 %v70
  %v125 = vunpack.c.l.b16 %v71
  %v126 = vunpack.c.l.b16 %v72
  %v127 = vunpack.c.l.b16 %v73
  %v128 = vunpack.c.l.b16 %v74
  %v129 = vunpack.c.l.b16 %v75
  %v130 = vunpack.c.l.b16 %v76
  %v131 = vunpack.c.l.b16 %v77
  %v132 = vunpack.c.l.b16 %v78
  %v133 = vunpack.c.l.b16 %v79
  %v134 = vunpack.c.l.b16 %v80
  %v135 = vpack.c.b16 %v111, %v110
  %v136 = vpack.c.b16 %v113, %v112
  %v137 = vpack.c.b16 %v115, %v114
  %v138 = vpack.c.b16 %v117, %v116
  %v139 = vpack.c.b16 %v119, %v118
  %v140 = vpack.c.b16 %v121, %v120
  %v141 = vpack.c.b16 %v123, %v122
  %v142 = vpack.c.b16 %v125, %v124
  %v143 = vpack.c.b16 %v127, %v126
  %v144 = vpack.c.b16 %v129, %v128
  %v145 = vpack.c.b16 %v131, %v130
  %v146 = vpack.c.b16 %v133, %v132
  %v147 = vpack.c.b16 %v134, %v134
  %v152 = vunpack.c.l.b16 %v81
  %v153 = vunpack.c.l.b16 %v82
  %v154 = vunpack.c.l.b16 %v83
  %v155 = vunpack.c.l.b16 %v84
  %v156 = vpack.c.b16 %v153, %v152
  %v157 = vpack.c.b16 %v155, %v154
  %vm160 = vcmask 261120
  %v162 = vsel %vm160, %v135, 0
  %v165 = vsel %vm160, %v136, 0
  %v168 = vsel %vm160, %v137, 0
  %v171 = vsel %vm160, %v138, 0
  %v174 = vsel %vm160, %v139, 0
  %v177 = vsel %vm160, %v140, 0
  %v180 = vsel %vm160, %v141, 0
  %v183 = vsel %vm160, %v142, 0
  %v186 = vsel %vm160, %v143, 0
  %v189 = vsel %vm160, %v144, 0
  %v192 = vsel %vm160, %v145, 0
  %v195 = vsel %vm160, %v146, 0
  %v198 = vsel %vm160, %v147, 0
  %200 = vmatprep.subr.bf16.mxu0 0
  %201 = vmatpush1.bf16.msra.mxu0 %v156
  %202 = vmatprep.subr.bf16.mxu0 0
  %203 = vmatpush1.bf16.msra.mxu0 %v157
  %204 = vmatprep.subr.bf16.mxu0 0
  %205 = vmatpush1.bf16.msra.mxu0 0
  %206 = vmatprep.subr.bf16.mxu0 0
  %207 = vmatpush1.bf16.msra.mxu0 0
  %208 = vmatprep.subr.bf16.mxu0 0
  %209 = vmatpush1.bf16.msra.mxu0 0
  %210 = vmatprep.subr.bf16.mxu0 0
  %211 = vmatpush1.bf16.msra.mxu0 0
  %212 = vmatprep.subr.bf16.mxu0 0
  %213 = vmatpush1.bf16.msra.mxu0 0
  %214 = vmatprep.subr.bf16.mxu0 0
  %215 = vmatpush1.bf16.msra.mxu0 0
  %216 = vmatprep.subr.bf16.mxu0 0
  %217 = vmatpush1.bf16.msra.mxu0 0
  %218 = vmatprep.subr.bf16.mxu0 0
  %219 = vmatpush1.bf16.msra.mxu0 0
  %220 = vmatprep.subr.bf16.mxu0 0
  %221 = vmatpush1.bf16.msra.mxu0 0
  %222 = vmatprep.subr.bf16.mxu0 0
  %223 = vmatpush1.bf16.msra.mxu0 0
  %224 = vmatprep.subr.bf16.mxu0 0
  %225 = vmatpush1.bf16.msra.mxu0 0
  %226 = vmatprep.subr.bf16.mxu0 0
  %227 = vmatpush1.bf16.msra.mxu0 0
  %228 = vmatprep.subr.bf16.mxu0 0
  %229 = vmatpush1.bf16.msra.mxu0 0
  %230 = vmatprep.subr.bf16.mxu0 0
  %231 = vmatpush1.bf16.msra.mxu0 0
  %232 = vmatprep.mubr.bf16.mxu0 0
  %233 = vmatmul.mubr.bf16.gmra.mrb[0].mxu0 %v162
  %v234 = vpop.f32.mrb[0].mxu0
  %v235 = vadd.f32 0.0, %v234
  %v236 = vpop.f32.mrb[0].mxu0
  %v237 = vpop.f32.mrb[0].mxu0
  %v238 = vadd.f32 0.0, %v237
  %v239 = vpop.f32.mrb[0].mxu0
  %240 = vmatprep.mubr.bf16.mxu0 0
  %241 = vmatmul.mubr.bf16.gmra.mrb[0].mxu0 %v165
  %v242 = vpop.f32.mrb[0].mxu0
  %v243 = vadd.f32 0.0, %v242
  %v244 = vpop.f32.mrb[0].mxu0
  %v245 = vpop.f32.mrb[0].mxu0
  %v246 = vadd.f32 0.0, %v245
  %v247 = vpop.f32.mrb[0].mxu0
  %248 = vmatprep.mubr.bf16.mxu0 0
  %249 = vmatmul.mubr.bf16.gmra.mrb[0].mxu0 %v168
  %v250 = vpop.f32.mrb[0].mxu0
  %v251 = vadd.f32 0.0, %v250
  %v252 = vpop.f32.mrb[0].mxu0
  %v253 = vpop.f32.mrb[0].mxu0
  %v254 = vadd.f32 0.0, %v253
  %v255 = vpop.f32.mrb[0].mxu0
  %256 = vmatprep.mubr.bf16.mxu0 0
  %257 = vmatmul.mubr.bf16.gmra.mrb[0].mxu0 %v171
  %v258 = vpop.f32.mrb[0].mxu0
  %v259 = vadd.f32 0.0, %v258
  %v260 = vpop.f32.mrb[0].mxu0
  %v261 = vpop.f32.mrb[0].mxu0
  %v262 = vadd.f32 0.0, %v261
  %v263 = vpop.f32.mrb[0].mxu0
  %264 = vmatprep.mubr.bf16.mxu0 0
  %265 = vmatmul.mubr.bf16.gmra.mrb[0].mxu0 %v174
  %v266 = vpop.f32.mrb[0].mxu0
  %v267 = vadd.f32 0.0, %v266
  %v268 = vpop.f32.mrb[0].mxu0
  %v269 = vpop.f32.mrb[0].mxu0
  %v270 = vadd.f32 0.0, %v269
  %v271 = vpop.f32.mrb[0].mxu0
  %272 = vmatprep.mubr.bf16.mxu0 0
  %273 = vmatmul.mubr.bf16.gmra.mrb[0].mxu0 %v177
  %v274 = vpop.f32.mrb[0].mxu0
  %v275 = vadd.f32 0.0, %v274
  %v276 = vpop.f32.mrb[0].mxu0
  %v277 = vpop.f32.mrb[0].mxu0
  %v278 = vadd.f32 0.0, %v277
  %v279 = vpop.f32.mrb[0].mxu0
  %280 = vmatprep.mubr.bf16.mxu0 0
  %281 = vmatmul.mubr.bf16.gmra.mrb[0].mxu0 %v180
  %v282 = vpop.f32.mrb[0].mxu0
  %v283 = vadd.f32 0.0, %v282
  %v284 = vpop.f32.mrb[0].mxu0
  %v285 = vpop.f32.mrb[0].mxu0
  %v286 = vadd.f32 0.0, %v285
  %v287 = vpop.f32.mrb[0].mxu0
  %288 = vmatprep.mubr.bf16.mxu0 0
  %289 = vmatmul.mubr.bf16.gmra.mrb[0].mxu0 %v183
  %v290 = vpop.f32.mrb[0].mxu0
  %v291 = vadd.f32 0.0, %v290
  %v292 = vpop.f32.mrb[0].mxu0
  %v293 = vpop.f32.mrb[0].mxu0
  %v294 = vadd.f32 0.0, %v293
  %v295 = vpop.f32.mrb[0].mxu0
  %296 = vmatprep.mubr.bf16.mxu0 0
  %297 = vmatmul.mubr.bf16.gmra.mrb[0].mxu0 %v186
  %v298 = vpop.f32.mrb[0].mxu0
  %v299 = vadd.f32 0.0, %v298
  %v300 = vpop.f32.mrb[0].mxu0
  %v301 = vpop.f32.mrb[0].mxu0
  %v302 = vadd.f32 0.0, %v301
  %v303 = vpop.f32.mrb[0].mxu0
  %304 = vmatprep.mubr.bf16.mxu0 0
  %305 = vmatmul.mubr.bf16.gmra.mrb[0].mxu0 %v189
  %v306 = vpop.f32.mrb[0].mxu0
  %v307 = vadd.f32 0.0, %v306
  %v308 = vpop.f32.mrb[0].mxu0
  %v309 = vpop.f32.mrb[0].mxu0
  %v310 = vadd.f32 0.0, %v309
  %v311 = vpop.f32.mrb[0].mxu0
  %312 = vmatprep.mubr.bf16.mxu0 0
  %313 = vmatmul.mubr.bf16.gmra.mrb[0].mxu0 %v192
  %v314 = vpop.f32.mrb[0].mxu0
  %v315 = vadd.f32 0.0, %v314
  %v316 = vpop.f32.mrb[0].mxu0
  %v317 = vpop.f32.mrb[0].mxu0
  %v318 = vadd.f32 0.0, %v317
  %v319 = vpop.f32.mrb[0].mxu0
  %320 = vmatprep.mubr.bf16.mxu0 0
  %321 = vmatmul.mubr.bf16.gmra.mrb[0].mxu0 %v195
  %v322 = vpop.f32.mrb[0].mxu0
  %v323 = vadd.f32 0.0, %v322
  %v324 = vpop.f32.mrb[0].mxu0
  %v325 = vpop.f32.mrb[0].mxu0
  %v326 = vadd.f32 0.0, %v325
  %v327 = vpop.f32.mrb[0].mxu0
  %328 = vmatprep.mubr.bf16.mxu0 0
  %329 = vmatmul.mubr.bf16.gmra.mrb[0].mxu0 %v198
  %v330 = vpop.f32.mrb[0].mxu0
  %v331 = vadd.f32 0.0, %v330
  %v332 = vpop.f32.mrb[0].mxu0
  %v333 = vpop.f32.mrb[0].mxu0
  %v334 = vpop.f32.mrb[0].mxu0
  %335 = vdwg.mxu0
  %v361 = vunpack.c.l.b16 %v27
  %v362 = vunpack.c.l.b16 %v28
  %v363 = vunpack.c.l.b16 %v29
  %v364 = vunpack.c.l.b16 %v30
  %v365 = vunpack.c.l.b16 %v31
  %v366 = vunpack.c.l.b16 %v32
  %v367 = vunpack.c.l.b16 %v33
  %v368 = vunpack.c.l.b16 %v34
  %v369 = vunpack.c.l.b16 %v35
  %v370 = vunpack.c.l.b16 %v36
  %v371 = vunpack.c.l.b16 %v37
  %v372 = vunpack.c.l.b16 %v38
  %v373 = vunpack.c.l.b16 %v39
  %v374 = vunpack.c.l.b16 %v40
  %v375 = vunpack.c.l.b16 %v41
  %v376 = vunpack.c.l.b16 %v42
  %v377 = vunpack.c.l.b16 %v43
  %v378 = vunpack.c.l.b16 %v44
  %v379 = vunpack.c.l.b16 %v45
  %v380 = vunpack.c.l.b16 %v46
  %v381 = vunpack.c.l.b16 %v47
  %v382 = vunpack.c.l.b16 %v48
  %v383 = vunpack.c.l.b16 %v49
  %v384 = vunpack.c.l.b16 %v50
  %v385 = vunpack.c.l.b16 %v51
  %v386 = vpack.c.b16 %v362, %v361
  %v387 = vpack.c.b16 %v364, %v363
  %v388 = vpack.c.b16 %v366, %v365
  %v389 = vpack.c.b16 %v368, %v367
  %v390 = vpack.c.b16 %v370, %v369
  %v391 = vpack.c.b16 %v372, %v371
  %v392 = vpack.c.b16 %v374, %v373
  %v393 = vpack.c.b16 %v376, %v375
  %v394 = vpack.c.b16 %v378, %v377
  %v395 = vpack.c.b16 %v380, %v379
  %v396 = vpack.c.b16 %v382, %v381
  %v397 = vpack.c.b16 %v384, %v383
  %v398 = vpack.c.b16 %v385, %v385
  %v403 = vunpack.c.l.b16 %v52
  %v404 = vunpack.c.l.b16 %v53
  %v405 = vunpack.c.l.b16 %v54
  %v406 = vunpack.c.l.b16 %v55
  %v407 = vpack.c.b16 %v404, %v403
  %v408 = vpack.c.b16 %v406, %v405
  %v412 = vsel %vm160, %v386, 0
  %v415 = vsel %vm160, %v387, 0
  %v418 = vsel %vm160, %v388, 0
  %v421 = vsel %vm160, %v389, 0
  %v424 = vsel %vm160, %v390, 0
  %v427 = vsel %vm160, %v391, 0
  %v430 = vsel %vm160, %v392, 0
  %v433 = vsel %vm160, %v393, 0
  %v436 = vsel %vm160, %v394, 0
  %v439 = vsel %vm160, %v395, 0
  %v442 = vsel %vm160, %v396, 0
  %v445 = vsel %vm160, %v397, 0
  %v448 = vsel %vm160, %v398, 0
  %450 = vmatprep.subr.bf16.mxu0 0
  %451 = vmatpush1.bf16.msra.mxu0 %v407
  %452 = vmatprep.subr.bf16.mxu0 0
  %453 = vmatpush1.bf16.msra.mxu0 %v408
  %454 = vmatprep.subr.bf16.mxu0 0
  %455 = vmatpush1.bf16.msra.mxu0 0
  %456 = vmatprep.subr.bf16.mxu0 0
  %457 = vmatpush1.bf16.msra.mxu0 0
  %458 = vmatprep.subr.bf16.mxu0 0
  %459 = vmatpush1.bf16.msra.mxu0 0
  %460 = vmatprep.subr.bf16.mxu0 0
  %461 = vmatpush1.bf16.msra.mxu0 0
  %462 = vmatprep.subr.bf16.mxu0 0
  %463 = vmatpush1.bf16.msra.mxu0 0
  %464 = vmatprep.subr.bf16.mxu0 0
  %465 = vmatpush1.bf16.msra.mxu0 0
  %466 = vmatprep.subr.bf16.mxu0 0
  %467 = vmatpush1.bf16.msra.mxu0 0
  %468 = vmatprep.subr.bf16.mxu0 0
  %469 = vmatpush1.bf16.msra.mxu0 0
  %470 = vmatprep.subr.bf16.mxu0 0
  %471 = vmatpush1.bf16.msra.mxu0 0
  %472 = vmatprep.subr.bf16.mxu0 0
  %473 = vmatpush1.bf16.msra.mxu0 0
  %474 = vmatprep.subr.bf16.mxu0 0
  %475 = vmatpush1.bf16.msra.mxu0 0
  %476 = vmatprep.subr.bf16.mxu0 0
  %477 = vmatpush1.bf16.msra.mxu0 0
  %478 = vmatprep.subr.bf16.mxu0 0
  %479 = vmatpush1.bf16.msra.mxu0 0
  %480 = vmatprep.subr.bf16.mxu0 0
  %481 = vmatpush1.bf16.msra.mxu0 0
  %482 = vmatprep.mubr.bf16.mxu0 0
  %483 = vmatmul.mubr.bf16.gmra.mrb[0].mxu0 %v412
  %v484 = vpop.f32.mrb[0].mxu0
  %v485 = vadd.f32 %v235, %v484
  %v486 = vpop.f32.mrb[0].mxu0
  %v487 = vpop.f32.mrb[0].mxu0
  %v488 = vadd.f32 %v238, %v487
  %v489 = vpop.f32.mrb[0].mxu0
  %490 = vmatprep.mubr.bf16.mxu0 0
  %491 = vmatmul.mubr.bf16.gmra.mrb[0].mxu0 %v415
  %v492 = vpop.f32.mrb[0].mxu0
  %v493 = vadd.f32 %v243, %v492
  %v494 = vpop.f32.mrb[0].mxu0
  %v495 = vpop.f32.mrb[0].mxu0
  %v496 = vadd.f32 %v246, %v495
  %v497 = vpop.f32.mrb[0].mxu0
  %498 = vmatprep.mubr.bf16.mxu0 0
  %499 = vmatmul.mubr.bf16.gmra.mrb[0].mxu0 %v418
  %v500 = vpop.f32.mrb[0].mxu0
  %v501 = vadd.f32 %v251, %v500
  %v502 = vpop.f32.mrb[0].mxu0
  %v503 = vpop.f32.mrb[0].mxu0
  %v504 = vadd.f32 %v254, %v503
  %v505 = vpop.f32.mrb[0].mxu0
  %506 = vmatprep.mubr.bf16.mxu0 0
  %507 = vmatmul.mubr.bf16.gmra.mrb[0].mxu0 %v421
  %v508 = vpop.f32.mrb[0].mxu0
  %v509 = vadd.f32 %v259, %v508
  %v510 = vpop.f32.mrb[0].mxu0
  %v511 = vpop.f32.mrb[0].mxu0
  %v512 = vadd.f32 %v262, %v511
  %v513 = vpop.f32.mrb[0].mxu0
  %514 = vmatprep.mubr.bf16.mxu0 0
  %515 = vmatmul.mubr.bf16.gmra.mrb[0].mxu0 %v424
  %v516 = vpop.f32.mrb[0].mxu0
  %v517 = vadd.f32 %v267, %v516
  %v518 = vpop.f32.mrb[0].mxu0
  %v519 = vpop.f32.mrb[0].mxu0
  %v520 = vadd.f32 %v270, %v519
  %v521 = vpop.f32.mrb[0].mxu0
  %522 = vmatprep.mubr.bf16.mxu0 0
  %523 = vmatmul.mubr.bf16.gmra.mrb[0].mxu0 %v427
  %v524 = vpop.f32.mrb[0].mxu0
  %v525 = vadd.f32 %v275, %v524
  %v526 = vpop.f32.mrb[0].mxu0
  %v527 = vpop.f32.mrb[0].mxu0
  %v528 = vadd.f32 %v278, %v527
  %v529 = vpop.f32.mrb[0].mxu0
  %530 = vmatprep.mubr.bf16.mxu0 0
  %531 = vmatmul.mubr.bf16.gmra.mrb[0].mxu0 %v430
  %v532 = vpop.f32.mrb[0].mxu0
  %v533 = vadd.f32 %v283, %v532
  %v534 = vpop.f32.mrb[0].mxu0
  %v535 = vpop.f32.mrb[0].mxu0
  %v536 = vadd.f32 %v286, %v535
  %v537 = vpop.f32.mrb[0].mxu0
  %538 = vmatprep.mubr.bf16.mxu0 0
  %539 = vmatmul.mubr.bf16.gmra.mrb[0].mxu0 %v433
  %v540 = vpop.f32.mrb[0].mxu0
  %v541 = vadd.f32 %v291, %v540
  %v542 = vpop.f32.mrb[0].mxu0
  %v543 = vpop.f32.mrb[0].mxu0
  %v544 = vadd.f32 %v294, %v543
  %v545 = vpop.f32.mrb[0].mxu0
  %546 = vmatprep.mubr.bf16.mxu0 0
  %547 = vmatmul.mubr.bf16.gmra.mrb[0].mxu0 %v436
  %v548 = vpop.f32.mrb[0].mxu0
  %v549 = vadd.f32 %v299, %v548
  %v550 = vpop.f32.mrb[0].mxu0
  %v551 = vpop.f32.mrb[0].mxu0
  %v552 = vadd.f32 %v302, %v551
  %v553 = vpop.f32.mrb[0].mxu0
  %554 = vmatprep.mubr.bf16.mxu0 0
  %555 = vmatmul.mubr.bf16.gmra.mrb[0].mxu0 %v439
  %v556 = vpop.f32.mrb[0].mxu0
  %v557 = vadd.f32 %v307, %v556
  %v558 = vpop.f32.mrb[0].mxu0
  %v559 = vpop.f32.mrb[0].mxu0
  %v560 = vadd.f32 %v310, %v559
  %v561 = vpop.f32.mrb[0].mxu0
  %562 = vmatprep.mubr.bf16.mxu0 0
  %563 = vmatmul.mubr.bf16.gmra.mrb[0].mxu0 %v442
  %v564 = vpop.f32.mrb[0].mxu0
  %v565 = vadd.f32 %v315, %v564
  %v566 = vpop.f32.mrb[0].mxu0
  %v567 = vpop.f32.mrb[0].mxu0
  %v568 = vadd.f32 %v318, %v567
  %v569 = vpop.f32.mrb[0].mxu0
  %570 = vmatprep.mubr.bf16.mxu0 0
  %571 = vmatmul.mubr.bf16.gmra.mrb[0].mxu0 %v445
  %v572 = vpop.f32.mrb[0].mxu0
  %v573 = vadd.f32 %v323, %v572
  %v574 = vpop.f32.mrb[0].mxu0
  %v575 = vpop.f32.mrb[0].mxu0
  %v576 = vadd.f32 %v326, %v575
  %v577 = vpop.f32.mrb[0].mxu0
  %578 = vmatprep.mubr.bf16.mxu0 0
  %579 = vmatmul.mubr.bf16.gmra.mrb[0].mxu0 %v448
  %v580 = vpop.f32.mrb[0].mxu0
  %v581 = vadd.f32 %v331, %v580
  %v582 = vpop.f32.mrb[0].mxu0
  %v583 = vpop.f32.mrb[0].mxu0
  %v584 = vpop.f32.mrb[0].mxu0
  %585 = vdwg.mxu0
  %v586 = vld [vmem:[%s4] sm:$0x1]
  %v588 = vlaneseq
  %v589 = vshrl.u32 %v588, 7
  %v590 = vsub.s32 0, %v589
  %v591 = vrot.slane %v586, %v590
  %v593 = vadd.f32 %v485, %v591
  %v594 = vadd.f32 %v488, %v591
  %v595 = vadd.f32 %v493, %v591
  %v596 = vadd.f32 %v496, %v591
  %v597 = vadd.f32 %v501, %v591
  %v598 = vadd.f32 %v504, %v591
  %v599 = vadd.f32 %v509, %v591
  %v600 = vadd.f32 %v512, %v591
  %v601 = vadd.f32 %v517, %v591
  %v602 = vadd.f32 %v520, %v591
  %v603 = vadd.f32 %v525, %v591
  %v604 = vadd.f32 %v528, %v591
  %v605 = vadd.f32 %v533, %v591
  %v606 = vadd.f32 %v536, %v591
  %v607 = vadd.f32 %v541, %v591
  %v608 = vadd.f32 %v544, %v591
  %v609 = vadd.f32 %v549, %v591
  %v610 = vadd.f32 %v552, %v591
  %v611 = vadd.f32 %v557, %v591
  %v612 = vadd.f32 %v560, %v591
  %v613 = vadd.f32 %v565, %v591
  %v614 = vadd.f32 %v568, %v591
  %v615 = vadd.f32 %v573, %v591
  %v616 = vadd.f32 %v576, %v591
  %v617 = vadd.f32 %v581, %v591
  %v618 = vmax.f32 %v593, 0.0
  %v619 = vmax.f32 %v594, 0.0
  %v620 = vmax.f32 %v595, 0.0
  %v621 = vmax.f32 %v596, 0.0
  %v622 = vmax.f32 %v597, 0.0
  %v623 = vmax.f32 %v598, 0.0
  %v624 = vmax.f32 %v599, 0.0
  %v625 = vmax.f32 %v600, 0.0
  %v626 = vmax.f32 %v601, 0.0
  %v627 = vmax.f32 %v602, 0.0
  %v628 = vmax.f32 %v603, 0.0
  %v629 = vmax.f32 %v604, 0.0
  %v630 = vmax.f32 %v605, 0.0
  %v631 = vmax.f32 %v606, 0.0
  %v632 = vmax.f32 %v607, 0.0
  %v633 = vmax.f32 %v608, 0.0
  %v634 = vmax.f32 %v609, 0.0
  %v635 = vmax.f32 %v610, 0.0
  %v636 = vmax.f32 %v611, 0.0
  %v637 = vmax.f32 %v612, 0.0
  %v638 = vmax.f32 %v613, 0.0
  %v639 = vmax.f32 %v614, 0.0
  %v640 = vmax.f32 %v615, 0.0
  %v641 = vmax.f32 %v616, 0.0
  %v642 = vmax.f32 %v617, 0.0
  %v643 = vpack.c.bf16 %v619, %v618
  %v644 = vpack.c.bf16 %v621, %v620
  %v645 = vpack.c.bf16 %v623, %v622
  %v646 = vpack.c.bf16 %v625, %v624
  %v647 = vpack.c.bf16 %v627, %v626
  %v648 = vpack.c.bf16 %v629, %v628
  %v649 = vpack.c.bf16 %v631, %v630
  %v650 = vpack.c.bf16 %v633, %v632
  %v651 = vpack.c.bf16 %v635, %v634
  %v652 = vpack.c.bf16 %v637, %v636
  %v653 = vpack.c.bf16 %v639, %v638
  %v654 = vpack.c.bf16 %v641, %v640
  %v655 = vpack.c.bf16 %v642, %v642
  %v656 = vld [vmem:[%s5] sm:$0xf]
  %v657 = vld [vmem:[%s5 + $0x4] sm:$0xf]
  %v658 = vld [vmem:[%s5 + $0x8] sm:$0xf]
  %v659 = vld [vmem:[%s5 + $0xc] sm:$0xf]
  %v660 = vld [vmem:[%s5 + $0x10] sm:$0xf]
  %v661 = vld [vmem:[%s5 + $0x14] sm:$0xf]
  %v662 = vld [vmem:[%s5 + $0x18] sm:$0xf]
  %v663 = vld [vmem:[%s5 + $0x1c] sm:$0xf]
  %v664 = vld [vmem:[%s6] sm:$0x1]
  %v666 = vlaneseq
  %v667 = vshrl.u32 %v666, 7
  %v668 = vsub.s32 0, %v667
  %v669 = vrot.slane %v664, %v668
  %v679 = vunpack.c.l.b16 %v656
  %v680 = vunpack.c.l.b16 %v657
  %v681 = vunpack.c.l.b16 %v658
  %v682 = vunpack.c.l.b16 %v659
  %v683 = vunpack.c.l.b16 %v660
  %v684 = vunpack.c.l.b16 %v661
  %v685 = vunpack.c.l.b16 %v662
  %v686 = vunpack.c.l.b16 %v663
  %v687 = vpack.c.b16 %v680, %v679
  %v688 = vpack.c.b16 %v682, %v681
  %v689 = vpack.c.b16 %v684, %v683
  %v690 = vpack.c.b16 %v686, %v685
  %vm695 = vcmask 523264
  %v697 = vsel %vm695, %v643, 0
  %v700 = vsel %vm695, %v644, 0
  %v703 = vsel %vm695, %v645, 0
  %v706 = vsel %vm695, %v646, 0
  %v709 = vsel %vm695, %v647, 0
  %v712 = vsel %vm695, %v648, 0
  %v715 = vsel %vm695, %v649, 0
  %v718 = vsel %vm695, %v650, 0
  %v721 = vsel %vm695, %v651, 0
  %v724 = vsel %vm695, %v652, 0
  %v727 = vsel %vm695, %v653, 0
  %v730 = vsel %vm695, %v654, 0
  %v733 = vsel %vm695, %v655, 0
  %735 = vmatprep.subr.bf16.mxu0 0
  %736 = vmatpush1.bf16.msra.mxu0 %v687
  %737 = vmatprep.subr.bf16.mxu0 0
  %738 = vmatpush1.bf16.msra.mxu0 %v688
  %739 = vmatprep.subr.bf16.mxu0 0
  %740 = vmatpush1.bf16.msra.mxu0 %v689
  %741 = vmatprep.subr.bf16.mxu0 0
  %742 = vmatpush1.bf16.msra.mxu0 %v690
  %743 = vmatprep.subr.bf16.mxu0 0
  %744 = vmatpush1.bf16.msra.mxu0 0
  %745 = vmatprep.subr.bf16.mxu0 0
  %746 = vmatpush1.bf16.msra.mxu0 0
  %747 = vmatprep.subr.bf16.mxu0 0
  %748 = vmatpush1.bf16.msra.mxu0 0
  %749 = vmatprep.subr.bf16.mxu0 0
  %750 = vmatpush1.bf16.msra.mxu0 0
  %751 = vmatprep.subr.bf16.mxu0 0
  %752 = vmatpush1.bf16.msra.mxu0 0
  %753 = vmatprep.subr.bf16.mxu0 0
  %754 = vmatpush1.bf16.msra.mxu0 0
  %755 = vmatprep.subr.bf16.mxu0 0
  %756 = vmatpush1.bf16.msra.mxu0 0
  %757 = vmatprep.subr.bf16.mxu0 0
  %758 = vmatpush1.bf16.msra.mxu0 0
  %759 = vmatprep.subr.bf16.mxu0 0
  %760 = vmatpush1.bf16.msra.mxu0 0
  %761 = vmatprep.subr.bf16.mxu0 0
  %762 = vmatpush1.bf16.msra.mxu0 0
  %763 = vmatprep.subr.bf16.mxu0 0
  %764 = vmatpush1.bf16.msra.mxu0 0
  %765 = vmatprep.subr.bf16.mxu0 0
  %766 = vmatpush1.bf16.msra.mxu0 0
  %767 = vmatprep.mubr.bf16.mxu0 0
  %768 = vmatmul.mubr.bf16.gmra.mrb[0].mxu0 %v697
  %v769 = vpop.f32.mrb[0].mxu0
  %v770 = vadd.f32 %v669, %v769
  %v771 = vpop.f32.mrb[0].mxu0
  %v772 = vpop.f32.mrb[0].mxu0
  %v773 = vadd.f32 %v669, %v772
  %v774 = vpop.f32.mrb[0].mxu0
  %775 = vmatprep.mubr.bf16.mxu0 0
  %776 = vmatmul.mubr.bf16.gmra.mrb[0].mxu0 %v700
  %v777 = vpop.f32.mrb[0].mxu0
  %v778 = vadd.f32 %v669, %v777
  %v779 = vpop.f32.mrb[0].mxu0
  %v780 = vpop.f32.mrb[0].mxu0
  %v781 = vadd.f32 %v669, %v780
  %v782 = vpop.f32.mrb[0].mxu0
  %783 = vmatprep.mubr.bf16.mxu0 0
  %784 = vmatmul.mubr.bf16.gmra.mrb[0].mxu0 %v703
  %v785 = vpop.f32.mrb[0].mxu0
  %v786 = vadd.f32 %v669, %v785
  %v787 = vpop.f32.mrb[0].mxu0
  %v788 = vpop.f32.mrb[0].mxu0
  %v789 = vadd.f32 %v669, %v788
  %v790 = vpop.f32.mrb[0].mxu0
  %791 = vmatprep.mubr.bf16.mxu0 0
  %792 = vmatmul.mubr.bf16.gmra.mrb[0].mxu0 %v706
  %v793 = vpop.f32.mrb[0].mxu0
  %v794 = vadd.f32 %v669, %v793
  %v795 = vpop.f32.mrb[0].mxu0
  %v796 = vpop.f32.mrb[0].mxu0
  %v797 = vadd.f32 %v669, %v796
  %v798 = vpop.f32.mrb[0].mxu0
  %799 = vmatprep.mubr.bf16.mxu0 0
  %800 = vmatmul.mubr.bf16.gmra.mrb[0].mxu0 %v709
  %v801 = vpop.f32.mrb[0].mxu0
  %v802 = vadd.f32 %v669, %v801
  %v803 = vpop.f32.mrb[0].mxu0
  %v804 = vpop.f32.mrb[0].mxu0
  %v805 = vadd.f32 %v669, %v804
  %v806 = vpop.f32.mrb[0].mxu0
  %807 = vmatprep.mubr.bf16.mxu0 0
  %808 = vmatmul.mubr.bf16.gmra.mrb[0].mxu0 %v712
  %v809 = vpop.f32.mrb[0].mxu0
  %v810 = vadd.f32 %v669, %v809
  %v811 = vpop.f32.mrb[0].mxu0
  %v812 = vpop.f32.mrb[0].mxu0
  %v813 = vadd.f32 %v669, %v812
  %v814 = vpop.f32.mrb[0].mxu0
  %815 = vmatprep.mubr.bf16.mxu0 0
  %816 = vmatmul.mubr.bf16.gmra.mrb[0].mxu0 %v715
  %v817 = vpop.f32.mrb[0].mxu0
  %v818 = vadd.f32 %v669, %v817
  %v819 = vpop.f32.mrb[0].mxu0
  %v820 = vpop.f32.mrb[0].mxu0
  %v821 = vadd.f32 %v669, %v820
  %v822 = vpop.f32.mrb[0].mxu0
  %823 = vmatprep.mubr.bf16.mxu0 0
  %824 = vmatmul.mubr.bf16.gmra.mrb[0].mxu0 %v718
  %v825 = vpop.f32.mrb[0].mxu0
  %v826 = vadd.f32 %v669, %v825
  %v827 = vpop.f32.mrb[0].mxu0
  %v828 = vpop.f32.mrb[0].mxu0
  %v829 = vadd.f32 %v669, %v828
  %v830 = vpop.f32.mrb[0].mxu0
  %831 = vmatprep.mubr.bf16.mxu0 0
  %832 = vmatmul.mubr.bf16.gmra.mrb[0].mxu0 %v721
  %v833 = vpop.f32.mrb[0].mxu0
  %v834 = vadd.f32 %v669, %v833
  %v835 = vpop.f32.mrb[0].mxu0
  %v836 = vpop.f32.mrb[0].mxu0
  %v837 = vadd.f32 %v669, %v836
  %v838 = vpop.f32.mrb[0].mxu0
  %839 = vmatprep.mubr.bf16.mxu0 0
  %840 = vmatmul.mubr.bf16.gmra.mrb[0].mxu0 %v724
  %v841 = vpop.f32.mrb[0].mxu0
  %v842 = vadd.f32 %v669, %v841
  %v843 = vpop.f32.mrb[0].mxu0
  %v844 = vpop.f32.mrb[0].mxu0
  %v845 = vadd.f32 %v669, %v844
  %v846 = vpop.f32.mrb[0].mxu0
  %847 = vmatprep.mubr.bf16.mxu0 0
  %848 = vmatmul.mubr.bf16.gmra.mrb[0].mxu0 %v727
  %v849 = vpop.f32.mrb[0].mxu0
  %v850 = vadd.f32 %v669, %v849
  %v851 = vpop.f32.mrb[0].mxu0
  %v852 = vpop.f32.mrb[0].mxu0
  %v853 = vadd.f32 %v669, %v852
  %v854 = vpop.f32.mrb[0].mxu0
  %855 = vmatprep.mubr.bf16.mxu0 0
  %856 = vmatmul.mubr.bf16.gmra.mrb[0].mxu0 %v730
  %v857 = vpop.f32.mrb[0].mxu0
  %v858 = vadd.f32 %v669, %v857
  %v859 = vpop.f32.mrb[0].mxu0
  %v860 = vpop.f32.mrb[0].mxu0
  %v861 = vadd.f32 %v669, %v860
  %v862 = vpop.f32.mrb[0].mxu0
  %863 = vmatprep.mubr.bf16.mxu0 0
  %864 = vmatmul.mubr.bf16.gmra.mrb[0].mxu0 %v733
  %v865 = vpop.f32.mrb[0].mxu0
  %v866 = vadd.f32 %v669, %v865
  %v867 = vpop.f32.mrb[0].mxu0
  %v868 = vpop.f32.mrb[0].mxu0
  %v869 = vpop.f32.mrb[0].mxu0
  %870 = vdwg.mxu0
  %v871 = vpack.c.bf16 %v773, %v770
  %v872 = vpack.c.bf16 %v781, %v778
  %v873 = vpack.c.bf16 %v789, %v786
  %v874 = vpack.c.bf16 %v797, %v794
  %v875 = vpack.c.bf16 %v805, %v802
  %v876 = vpack.c.bf16 %v813, %v810
  %v877 = vpack.c.bf16 %v821, %v818
  %v878 = vpack.c.bf16 %v829, %v826
  %v879 = vpack.c.bf16 %v837, %v834
  %v880 = vpack.c.bf16 %v845, %v842
  %v881 = vpack.c.bf16 %v853, %v850
  %v882 = vpack.c.bf16 %v861, %v858
  %v883 = vpack.c.bf16 %v866, %v866
  %v897 = vunpack.c.l.b16 %v871
  %v898 = vunpack.c.h.b16 %v871
  %v899 = vunpack.c.l.b16 %v872
  %v900 = vunpack.c.h.b16 %v872
  %v901 = vunpack.c.l.b16 %v873
  %v902 = vunpack.c.h.b16 %v873
  %v903 = vunpack.c.l.b16 %v874
  %v904 = vunpack.c.h.b16 %v874
  %v905 = vunpack.c.l.b16 %v875
  %v906 = vunpack.c.h.b16 %v875
  %v907 = vunpack.c.l.b16 %v876
  %v908 = vunpack.c.h.b16 %v876
  %v909 = vunpack.c.l.b16 %v877
  %v910 = vunpack.c.h.b16 %v877
  %v911 = vunpack.c.l.b16 %v878
  %v912 = vunpack.c.h.b16 %v878
  %v913 = vunpack.c.l.b16 %v879
  %v914 = vunpack.c.h.b16 %v879
  %v915 = vunpack.c.l.b16 %v880
  %v916 = vunpack.c.h.b16 %v880
  %v917 = vunpack.c.l.b16 %v881
  %v918 = vunpack.c.h.b16 %v881
  %v919 = vunpack.c.l.b16 %v882
  %v920 = vunpack.c.h.b16 %v882
  %v921 = vunpack.c.l.b16 %v883
  %v922 = vpack.c.b16 %v897, %v897
  %v923 = vpack.c.b16 %v898, %v898
  %v924 = vpack.c.b16 %v899, %v899
  %v925 = vpack.c.b16 %v900, %v900
  %v926 = vpack.c.b16 %v901, %v901
  %v927 = vpack.c.b16 %v902, %v902
  %v928 = vpack.c.b16 %v903, %v903
  %v929 = vpack.c.b16 %v904, %v904
  %v930 = vpack.c.b16 %v905, %v905
  %v931 = vpack.c.b16 %v906, %v906
  %v932 = vpack.c.b16 %v907, %v907
  %v933 = vpack.c.b16 %v908, %v908
  %v934 = vpack.c.b16 %v909, %v909
  %v935 = vpack.c.b16 %v910, %v910
  %v936 = vpack.c.b16 %v911, %v911
  %v937 = vpack.c.b16 %v912, %v912
  %v938 = vpack.c.b16 %v913, %v913
  %v939 = vpack.c.b16 %v914, %v914
  %v940 = vpack.c.b16 %v915, %v915
  %v941 = vpack.c.b16 %v916, %v916
  %v942 = vpack.c.b16 %v917, %v917
  %v943 = vpack.c.b16 %v918, %v918
  %v944 = vpack.c.b16 %v919, %v919
  %v945 = vpack.c.b16 %v920, %v920
  %v946 = vpack.c.b16 %v921, %v921
  %vm972 = vcmask 11264
  %973 = vst.msk [vmem:[%s7] sm:$0xf] %vm972, %v922
  %974 = vst.msk [vmem:[%s7 + $0x4] sm:$0xf] %vm972, %v923
  %975 = vst.msk [vmem:[%s7 + $0x8] sm:$0xf] %vm972, %v924
  %976 = vst.msk [vmem:[%s7 + $0xc] sm:$0xf] %vm972, %v925
  %977 = vst.msk [vmem:[%s7 + $0x10] sm:$0xf] %vm972, %v926
  %978 = vst.msk [vmem:[%s7 + $0x14] sm:$0xf] %vm972, %v927
  %979 = vst.msk [vmem:[%s7 + $0x18] sm:$0xf] %vm972, %v928
  %980 = vst.msk [vmem:[%s7 + $0x1c] sm:$0xf] %vm972, %v929
  %981 = vst.msk [vmem:[%s7 + $0x20] sm:$0xf] %vm972, %v930
  %982 = vst.msk [vmem:[%s7 + $0x24] sm:$0xf] %vm972, %v931
  %983 = vst.msk [vmem:[%s7 + $0x28] sm:$0xf] %vm972, %v932
  %984 = vst.msk [vmem:[%s7 + $0x2c] sm:$0xf] %vm972, %v933
  %985 = vst.msk [vmem:[%s7 + $0x30] sm:$0xf] %vm972, %v934
  %986 = vst.msk [vmem:[%s7 + $0x34] sm:$0xf] %vm972, %v935
  %987 = vst.msk [vmem:[%s7 + $0x38] sm:$0xf] %vm972, %v936
  %988 = vst.msk [vmem:[%s7 + $0x3c] sm:$0xf] %vm972, %v937
  %989 = vst.msk [vmem:[%s7 + $0x40] sm:$0xf] %vm972, %v938
  %990 = vst.msk [vmem:[%s7 + $0x44] sm:$0xf] %vm972, %v939
  %991 = vst.msk [vmem:[%s7 + $0x48] sm:$0xf] %vm972, %v940
  %992 = vst.msk [vmem:[%s7 + $0x4c] sm:$0xf] %vm972, %v941
  %993 = vst.msk [vmem:[%s7 + $0x50] sm:$0xf] %vm972, %v942
  %994 = vst.msk [vmem:[%s7 + $0x54] sm:$0xf] %vm972, %v943
  %995 = vst.msk [vmem:[%s7 + $0x58] sm:$0xf] %vm972, %v944
  %996 = vst.msk [vmem:[%s7 + $0x5c] sm:$0xf] %vm972, %v945
  %997 = vst.msk [vmem:[%s7 + $0x60] sm:$0xf] %vm972, %v946
  // Predicated region
  $region30: #{tpu_custom_call.1} parent=0 // pred_check
    _
  $region31: #{tpu_custom_call.1} parent=0 // pred_check_branch
    %999 = sbr.rel (0) target = $region33
  $region32: #{tpu_custom_call.1} parent=0 // pred_region
    _
  $region33: #{tpu_custom_call.1} parent=0 // pred_fallthru
    _
  // Predicated region
  $region34: #{tpu_custom_call.1} parent=0 // pred_check
    _
  $region35: #{tpu_custom_call.1} parent=0 // pred_check_branch
    %1001 = sbr.rel (0) target = $region37
  $region36: #{tpu_custom_call.1} parent=0 // pred_region
    _
  $region37: #{tpu_custom_call.1} parent=0 // pred_fallthru
    _

</llo_original>
